<compile_context>
chip_gen: v5e
topology: v5e:2x2
jax: 0.10.0
libtpu: 0.0.40
codegen_flags: <defaults>
</compile_context>

<pallas_src>
import functools

import jax
import jax.numpy as jnp
from jax.experimental import pallas as pl
from jax.experimental.pallas import tpu as pltpu

BN_EPS = 1e-5


# ----------------------------------------------------------------------------- kernel
def _block_diag_mask(group, bi, bo):
    """Boolean (group*bi, group*bo) block-diagonal pattern.

    Block ids are computed with a float floor (multiply by reciprocal) instead of vector
    integer division, which keeps the lowering on plain VPU ops.
    """
    shape = (group * bi, group * bo)
    rows = jax.lax.broadcasted_iota(jnp.int32, shape, 0).astype(jnp.float32)
    cols = jax.lax.broadcasted_iota(jnp.int32, shape, 1).astype(jnp.float32)
    row_blk = jnp.floor((rows + 0.5) * (1.0 / bi))
    col_blk = jnp.floor((cols + 0.5) * (1.0 / bo))
    return row_blk == col_blk


def _expand_block_diag(w2d, mask, group):
    """Compact (group*bi, bo) weights -> (group*bi, group*bo) block-diagonal operand."""
    if group == 1:
        return w2d
    tiled = jnp.concatenate([w2d] * group, axis=-1)          # lane-replicate, then mask
    return jnp.where(mask, tiled, jnp.zeros((), w2d.dtype))


def _fc_head_kernel(*refs, num_layers, group, l_in, l_out):
    if num_layers > 1:
        x_ref, w0_ref, wrest_ref, gamma_ref, beta_ref, b_ref, o_ref = refs
    else:
        x_ref, w0_ref, b_ref, o_ref = refs
        wrest_ref = gamma_ref = beta_ref = None

    wdt = w0_ref.dtype                                        # bf16 (MXU fast path) or f32
    bias = b_ref[...]                                         # (num_layers, G*L_out) f32

    # Layer 0: one fused MXU matmul covering all G channels of this grid step.
    x = x_ref[...].astype(wdt)                                # (N, G*L_in), single hoisted cast
    mask0 = _block_diag_mask(group, l_in, l_out) if group > 1 else None
    w0 = _expand_block_diag(w0_ref[...], mask0, group)        # (G*L_in, G*L_out)
    h = jnp.dot(x, w0, preferred_element_type=jnp.float32) + bias[0:1]

    if num_layers > 1:
        gamma = gamma_ref[...]                                # (n_rest, G*L_out) f32
        beta = beta_ref[...]
        mask_h = _block_diag_mask(group, l_out, l_out) if group > 1 else None  # hoisted
        for l in range(1, num_layers):                        # static unroll over layers
            h = jnp.maximum(h, 0.0)                           # ReLU (f32, VPU)
            # BatchNorm1d, training-mode batch stats; centered (two-pass) variance.
            mean = jnp.mean(h, axis=0, keepdims=True)
            hc = h - mean
            var = jnp.mean(hc * hc, axis=0, keepdims=True)
            h = hc * jax.lax.rsqrt(var + BN_EPS)
            h = h * gamma[l - 1:l] + beta[l - 1:l]            # BN affine in f32 (PyTorch order)
            wl = _expand_block_diag(wrest_ref[l - 1], mask_h, group)
            h = (jnp.dot(h.astype(wdt), wl, preferred_element_type=jnp.float32)
                 + bias[l:l + 1])

    o_ref[...] = h.astype(o_ref.dtype)


# ----------------------------------------------------------------------------- device / tiling
def _device_info():
    """(vmem_capacity_bytes, mxu_lane_width, tensorcores_per_chip) with safe fallbacks."""
    vmem_cap = 128 << 20
    try:
        cap = getattr(pltpu.get_tpu_info(), "vmem_capacity_bytes", None)
        if cap:
            vmem_cap = int(cap)
    except Exception:
        pass
    kind = ""
    try:
        kind = jax.devices()[0].device_kind.lower()
    except Exception:
        pass
    if vmem_cap <= (64 << 20) or "7" in kind:     # v7x: 64 MiB/TC, 2 TCs, 256-wide MXU
        return vmem_cap, 256, 2
    if "v6" in kind or "trillium" in kind:        # v6e: 128 MiB, 1 TC, 256-wide MXU
        return vmem_cap, 256, 1
    return vmem_cap, 128, 1                       # v5e / older: 128 MiB, 128-wide MXU


def _vmem_budget(vmem_cap):
    # v7x (64 MiB/TC): ~48 MiB usable; 128 MiB parts: up to ~96 MiB.
    return max(min(vmem_cap - (16 << 20), (3 * vmem_cap) // 4), 32 << 20)


def _lane_pad(n):
    return -(-n // 128) * 128


def _footprint(N, g, L_in, L_out, num_layers, w_bytes, weight_bufs=2):
    """Rough per-step VMEM bytes: pipelined blocks + single-buffered compute temps."""
    n_rest = num_layers - 1
    x_blk = N * _lane_pad(g * L_in) * 4
    o_blk = N * _lane_pad(g * L_out) * 4
    w_blk = (g * L_in + n_rest * g * L_out) * _lane_pad(L_out) * w_bytes
    vec_blk = (num_layers + 2 * n_rest) * 8 * _lane_pad(g * L_out) * 4
    temps = (N * _lane_pad(g * L_in) * w_bytes                          # casted x copy
             + max(_lane_pad(g * L_in), _lane_pad(g * L_out))           # one expanded
             * _lane_pad(g * L_out) * w_bytes                           #   block-diag weight
             + 3 * N * _lane_pad(g * L_out) * 4)                        # live f32 h slabs
    return 2 * (x_blk + o_blk + vec_blk) + weight_bufs * w_blk + temps


def _choose_group(C, N, L_in, L_out, num_layers, w_bytes, dev):
    """Channels per grid step.

    Legality: G divides C and either G == C (full-dim blocks) or both G*L_in and G*L_out
    are multiples of 128 (lane-dense x / weight / output blocks).
    Selection: minimize modeled wall clock = steps-per-TensorCore * (MXU pushes + step
    overhead). This prefers MXU-native widths (256 on v6e/v7x, 128 on v5e), even step
    counts on v7x's two cores, and the fewest steps on single-core chips, while bounding
    the block-diagonal zero padding.
    """
    vmem_cap, mxu, cores = dev
    budget = _vmem_budget(vmem_cap)
    n_rest = num_layers - 1
    legal = [g for g in range(1, C + 1)
             if C % g == 0 and (g == C or ((g * L_in) % 128 == 0 and (g * L_out) % 128 == 0))]
    fitting = [g for g in legal
               if _footprint(N, g, L_in, L_out, num_layers, w_bytes) <= budget]
    if not fitting:
        # TODO(synk): add N / contraction tiling for shapes whose smallest legal block
        # still exceeds VMEM.
        fitting = [min(legal)]

    def wall(g):
        steps_per_core = -(-(C // g) // cores)
        nb = -(-(g * L_out) // mxu)
        pushes = nb * (-(-(g * L_in) // mxu) + n_rest * (-(-(g * L_out) // mxu)))
        return steps_per_core * (pushes * max(N, 8) + 600.0)   # ~0.35 us/step overhead

    return min(fitting, key=wall)


def _weight_spec(block_shape, index_map, deep_buffer):
    """Weight BlockSpec; triple-buffered on 128 MiB parts when there is VMEM headroom."""
    if deep_buffer and hasattr(pl, "Buffered"):
        try:
            return pl.BlockSpec(block_shape, index_map, pipeline_mode=pl.Buffered(3))
        except TypeError:                                      # older BlockSpec signature
            pass
    return pl.BlockSpec(block_shape, index_map)


# ----------------------------------------------------------------------------- params / wrapper
def prepare_params(params, weight_dtype=jnp.bfloat16):
    """Repack parameters into flat, lane-dense, channel-major slabs.

      w0:    (C*L_in, L_out)                 weight_dtype
      wrest: (num_layers-1, C*L_out, L_out)  weight_dtype  (None if num_layers == 1)
      gamma: (num_layers-1, C*L_out)         float32       (None if num_layers == 1)
      beta:  (num_layers-1, C*L_out)         float32       (None if num_layers == 1)
      bias:  (num_layers,   C*L_out)         float32
    """
    w0, wrest, b, gamma, beta = params
    C, L_in, L_out = w0.shape
    num_layers = b.shape[1]
    n_rest = num_layers - 1

    w0f = w0.astype(weight_dtype).reshape(C * L_in, L_out)
    biasf = (b[:, :, 0, :].transpose(1, 0, 2)
             .reshape(num_layers, C * L_out).astype(jnp.float32))
    if n_rest > 0:
        wrestf = (wrest.astype(weight_dtype).transpose(1, 0, 2, 3)
                  .reshape(n_rest, C * L_out, L_out))
        gammaf = (gamma[:, :, 0, :].transpose(1, 0, 2)
                  .reshape(n_rest, C * L_out).astype(jnp.float32))
        betaf = (beta[:, :, 0, :].transpose(1, 0, 2)
                 .reshape(n_rest, C * L_out).astype(jnp.float32))
    else:
        wrestf = gammaf = betaf = None
    return w0f, wrestf, gammaf, betaf, biasf


def fc_head_forward(x, prepped, num_layers, *, group=None):
    """x: (N, C, L_in) -> (N, C, L_out). `prepped` comes from prepare_params."""
    w0f, wrestf, gammaf, betaf, biasf = prepped
    N, C, L_in = x.shape
    L_out = w0f.shape[-1]
    n_rest = num_layers - 1
    w_bytes = jnp.dtype(w0f.dtype).itemsize

    dev = _device_info()
    G = group if group is not None else _choose_group(
        C, N, L_in, L_out, num_layers, w_bytes, dev)
    assert C % G == 0 and (G == C or ((G * L_in) % 128 == 0 and (G * L_out) % 128 == 0)), G
    steps = C // G

    deep_buffer = (steps >= 3 and dev[0] >= (128 << 20)
                   and _footprint(N, G, L_in, L_out, num_layers, w_bytes, 3)
                   <= _vmem_budget(dev[0]))

    x2d = x.reshape(N, C * L_in)                               # free contiguous view

    kernel = functools.partial(_fc_head_kernel, num_layers=num_layers, group=G,
                               l_in=L_in, l_out=L_out)

    in_specs = [pl.BlockSpec((N, G * L_in), lambda i: (0, i)),             # flat x slab
                _weight_spec((G * L_in, L_out), lambda i: (i, 0), deep_buffer)]
    args = [x2d, w0f]
    if num_layers > 1:
        in_specs += [
            _weight_spec((n_rest, G * L_out, L_out), lambda i: (0, i, 0), deep_buffer),
            pl.BlockSpec((n_rest, G * L_out), lambda i: (0, i)),           # gamma
            pl.BlockSpec((n_rest, G * L_out), lambda i: (0, i)),           # beta
        ]
        args += [wrestf, gammaf, betaf]
    in_specs.append(pl.BlockSpec((num_layers, G * L_out), lambda i: (0, i)))  # bias
    args.append(biasf)

    flops = 2 * N * C * G * (L_in * L_out + n_rest * L_out * L_out)
    bytes_accessed = (4 * N * C * (L_in + L_out)
                      + w_bytes * C * (L_in * L_out + n_rest * L_out * L_out)
                      + 4 * C * L_out * (num_layers + 2 * n_rest))
    cost = pl.CostEstimate(flops=flops, transcendentals=C * n_rest * L_out,
                           bytes_accessed=bytes_accessed)

    vmem_limit = int(min(max(_footprint(N, G, L_in, L_out, num_layers, w_bytes,
                                        3 if deep_buffer else 2) + (8 << 20),
                             32 << 20),
                         _vmem_budget(dev[0])))

    out2d = pl.pallas_call(
        kernel,
        out_shape=jax.ShapeDtypeStruct((N, C * L_out), x.dtype),
        grid_spec=pltpu.PrefetchScalarGridSpec(
            num_scalar_prefetch=0,
            grid=(steps,),
            in_specs=in_specs,
            out_specs=pl.BlockSpec((N, G * L_out), lambda i: (0, i)),
        ),
        compiler_params=pltpu.CompilerParams(
            dimension_semantics=("parallel",),
            vmem_limit_bytes=vmem_limit),
        cost_estimate=cost,
    )(*args)

    # (N, C*L_out) -> (N, C, L_out): contiguous split of the last dim, free reshape.
    return out2d.reshape(N, C, L_out)


# ----------------------------------------------------------------------------- params / reference
def init_params(key, input_size, output_size, num_channels, num_layers,
                random_bn_affine=True):
    """Deterministic params matching create_fc_head's parameter shapes."""
    n_rest = num_layers - 1
    k0, k1, k2, k3, k4 = jax.random.split(key, 5)
    bound0 = 1.0 / float(input_size) ** 0.5
    bound1 = 1.0 / float(output_size) ** 0.5
    # Linear weights stored transposed: (in, out).
    w0 = jax.random.uniform(k0, (num_channels, input_size, output_size),
                            jnp.float32, -bound0, bound0)
    wrest = jax.random.uniform(k1, (num_channels, n_rest, output_size, output_size),
                               jnp.float32, -bound1, bound1)
    b = jax.random.uniform(k2, (num_channels, num_layers, 1, output_size),
                           jnp.float32, -1.0, 1.0)
    scale = jnp.array([bound0] + [bound1] * n_rest, jnp.float32)
    b = b * scale[None, :, None, None]
    if random_bn_affine and n_rest > 0:
        gamma = jax.random.uniform(k3, (num_channels, n_rest, 1, output_size),
                                   jnp.float32, 0.5, 1.5)
        beta = jax.random.uniform(k4, (num_channels, n_rest, 1, output_size),
                                  jnp.float32, -0.5, 0.5)
    else:
        gamma = jnp.ones((num_channels, n_rest, 1, output_size), jnp.float32)
        beta = jnp.zeros((num_channels, n_rest, 1, output_size), jnp.float32)
    return w0, wrest, b, gamma, beta


def reference_forward(x, params, num_layers, dot_dtype=jnp.float32):
    """Plain-JAX mirror of the PyTorch forward (training-mode BN, per-channel loop)."""
    w0, wrest, b, gamma, beta = params

    def dot(a, w):
        return jnp.dot(a.astype(dot_dtype), w.astype(dot_dtype),
                       preferred_element_type=jnp.float32)

    outs = []
    for c in range(x.shape[1]):
        h = dot(x[:, c, :], w0[c]) + b[c, 0]
        for l in range(1, num_layers):
            h = jnp.maximum(h, 0.0)
            mean = jnp.mean(h, axis=0, keepdims=True)
            var = jnp.mean(jnp.square(h - mean), axis=0, keepdims=True)
            h = (h - mean) / jnp.sqrt(var + BN_EPS)
            h = h * gamma[c, l - 1] + beta[c, l - 1]
            h = dot(h, wrest[c, l - 1]) + b[c, l]
        outs.append(h[:, None, :])
    return jnp.concatenate(outs, axis=1)


# ----------------------------------------------------------------------------- test
if __name__ == "__main__":
    key = jax.random.PRNGKey(0)
    kx, kp, kx2, kp2 = jax.random.split(key, 4)

    # Config A: (N, C, L_in) = (8, 4, 16) -> (8, 4, 32), 3 layers, single grid step (G == C).
    N, C, L_in, L_out, num_layers = 8, 4, 16, 32, 3
    x = jax.random.normal(kx, (N, C, L_in), jnp.float32)
    params = init_params(kp, L_in, L_out, C, num_layers, random_bn_affine=True)

    # 1) f32 matmuls, random BN gamma/beta: tight semantic check.
    out = fc_head_forward(x, prepare_params(params, jnp.float32), num_layers)
    out = jax.block_until_ready(out)
    ref = reference_forward(x, params, num_layers, dot_dtype=jnp.float32)
    assert out.shape == (N, C, L_out), out.shape
    assert jnp.allclose(out, ref, atol=1e-3, rtol=1e-3), float(jnp.max(jnp.abs(out - ref)))

    # 2) bf16 matmul operands (production path) with non-trivial gamma/beta, checked
    #    against a matched bf16-precision reference (affine applied in f32 in both).
    out2 = fc_head_forward(x, prepare_params(params, jnp.bfloat16), num_layers)
    out2 = jax.block_until_ready(out2)
    ref2 = reference_forward(x, params, num_layers, dot_dtype=jnp.bfloat16)
    assert jnp.allclose(out2, ref2, atol=5e-3, rtol=5e-3), float(jnp.max(jnp.abs(out2 - ref2)))

    # 3) Single-layer head: no ReLU/BN; wrest/gamma/beta inputs dropped entirely.
    params1 = init_params(kp, L_in, L_out, C, 1)
    out3 = fc_head_forward(x, prepare_params(params1, jnp.float32), 1)
    out3 = jax.block_until_ready(out3)
    ref3 = reference_forward(x, params1, 1)
    assert jnp.allclose(out3, ref3, atol=1e-3, rtol=1e-3), float(jnp.max(jnp.abs(out3 - ref3)))

    # 4) Multi-step grid (G < C): (16, 16, 16) -> (16, 16, 32), 2 layers, forced G=8.
    N2, C2, NL2 = 16, 16, 2
    x4 = jax.random.normal(kx2, (N2, C2, L_in), jnp.float32)
    params4 = init_params(kp2, L_in, L_out, C2, NL2, random_bn_affine=True)
    out4 = fc_head_forward(x4, prepare_params(params4, jnp.float32), NL2, group=8)
    out4 = jax.block_until_ready(out4)
    ref4 = reference_forward(x4, params4, NL2)
    assert out4.shape == (N2, C2, L_out), out4.shape
    assert jnp.allclose(out4, ref4, atol=1e-3, rtol=1e-3), float(jnp.max(jnp.abs(out4 - ref4)))

    print("KERNEL_OK")
</pallas_src>

<mosaic_0001>
module attributes {stable_mosaic.version = 11 : i64} {
  func.func @_fc_head_kernel(%arg0: i32, %arg1: memref<8x64xf32, #tpu.memory_space<vmem>>, %arg2: memref<64x32xf32, #tpu.memory_space<vmem>>, %arg3: memref<2x128x32xf32, #tpu.memory_space<vmem>>, %arg4: memref<2x128xf32, #tpu.memory_space<vmem>>, %arg5: memref<2x128xf32, #tpu.memory_space<vmem>>, %arg6: memref<3x128xf32, #tpu.memory_space<vmem>>, %arg7: memref<8x128xf32, #tpu.memory_space<vmem>>) attributes {dimension_semantics = [#tpu.dimension_semantics<parallel>], iteration_bounds = array<i64: 1>, scalar_prefetch = 0 : i64, scratch_operands = 0 : i64, tpu.core_type = #tpu.core_type<tc>, window_params = [{transform_indices = @transform_0, window_bounds = array<i64: 8, 64>}, {transform_indices = @transform_1, window_bounds = array<i64: 64, 32>}, {transform_indices = @transform_2, window_bounds = array<i64: 2, 128, 32>}, {transform_indices = @transform_3, window_bounds = array<i64: 2, 128>}, {transform_indices = @transform_4, window_bounds = array<i64: 2, 128>}, {transform_indices = @transform_5, window_bounds = array<i64: 3, 128>}, {transform_indices = @transform_6, window_bounds = array<i64: 8, 128>}]} {
    %c0 = arith.constant 0 : index
    %c0_0 = arith.constant 0 : index
    %0 = vector.load %arg6[%c0, %c0_0] : memref<3x128xf32, #tpu.memory_space<vmem>>, vector<3x128xf32>
    %c0_1 = arith.constant 0 : index
    %c0_2 = arith.constant 0 : index
    %1 = vector.load %arg1[%c0_1, %c0_2] : memref<8x64xf32, #tpu.memory_space<vmem>>, vector<8x64xf32>
    %2 = tpu.iota {dimensions = array<i32: 0>} : vector<64x128xi32>
    %3 = arith.sitofp %2 : vector<64x128xi32> to vector<64x128xf32>
    %4 = tpu.iota {dimensions = array<i32: 1>} : vector<64x128xi32>
    %5 = arith.sitofp %4 : vector<64x128xi32> to vector<64x128xf32>
    %cst = arith.constant 5.000000e-01 : f32
    %6 = vector.broadcast %cst : f32 to vector<64x128xf32>
    %7 = arith.addf %3, %6 : vector<64x128xf32>
    %cst_3 = arith.constant 6.250000e-02 : f32
    %8 = vector.broadcast %cst_3 : f32 to vector<64x128xf32>
    %9 = arith.mulf %7, %8 : vector<64x128xf32>
    %10 = math.floor %9 : vector<64x128xf32>
    %cst_4 = arith.constant 5.000000e-01 : f32
    %11 = vector.broadcast %cst_4 : f32 to vector<64x128xf32>
    %12 = arith.addf %5, %11 : vector<64x128xf32>
    %cst_5 = arith.constant 3.125000e-02 : f32
    %13 = vector.broadcast %cst_5 : f32 to vector<64x128xf32>
    %14 = arith.mulf %12, %13 : vector<64x128xf32>
    %15 = math.floor %14 : vector<64x128xf32>
    %16 = arith.cmpf oeq, %10, %15 : vector<64x128xf32>
    %c0_6 = arith.constant 0 : index
    %c0_7 = arith.constant 0 : index
    %17 = vector.load %arg2[%c0_6, %c0_7] : memref<64x32xf32, #tpu.memory_space<vmem>>, vector<64x32xf32>
    %18 = tpu.concatenate %17, %17, %17, %17 in 1 : vector<64x32xf32>, vector<64x32xf32>, vector<64x32xf32>, vector<64x32xf32> -> vector<64x128xf32>
    %cst_8 = arith.constant 0.000000e+00 : f32
    %19 = vector.broadcast %cst_8 : f32 to vector<64x128xf32>
    %20 = arith.select %16, %18, %19 : vector<64x128xi1>, vector<64x128xf32>
    %cst_9 = arith.constant dense<0.000000e+00> : vector<8x128xf32>
    %21 = tpu.matmul %1, %20, %cst_9 {dimension_numbers = #tpu.dot_dimension_numbers<[1], [0], [0], [1], [0, 0, 1, 1], [], []>} : vector<8x64xf32>, vector<64x128xf32>, vector<8x128xf32> -> vector<8x128xf32>
    %22 = vector.extract_strided_slice %0 {offsets = [0, 0], sizes = [1, 128], strides = [1, 1]} : vector<3x128xf32> to vector<1x128xf32>
    %23 = vector.broadcast %22 : vector<1x128xf32> to vector<8x128xf32>
    %24 = arith.addf %21, %23 : vector<8x128xf32>
    %c0_10 = arith.constant 0 : index
    %c0_11 = arith.constant 0 : index
    %25 = vector.load %arg4[%c0_10, %c0_11] : memref<2x128xf32, #tpu.memory_space<vmem>>, vector<2x128xf32>
    %c0_12 = arith.constant 0 : index
    %c0_13 = arith.constant 0 : index
    %26 = vector.load %arg5[%c0_12, %c0_13] : memref<2x128xf32, #tpu.memory_space<vmem>>, vector<2x128xf32>
    %27 = tpu.iota {dimensions = array<i32: 0>} : vector<128x128xi32>
    %28 = arith.sitofp %27 : vector<128x128xi32> to vector<128x128xf32>
    %29 = tpu.iota {dimensions = array<i32: 1>} : vector<128x128xi32>
    %30 = arith.sitofp %29 : vector<128x128xi32> to vector<128x128xf32>
    %cst_14 = arith.constant 5.000000e-01 : f32
    %31 = vector.broadcast %cst_14 : f32 to vector<128x128xf32>
    %32 = arith.addf %28, %31 : vector<128x128xf32>
    %cst_15 = arith.constant 3.125000e-02 : f32
    %33 = vector.broadcast %cst_15 : f32 to vector<128x128xf32>
    %34 = arith.mulf %32, %33 : vector<128x128xf32>
    %35 = math.floor %34 : vector<128x128xf32>
    %cst_16 = arith.constant 5.000000e-01 : f32
    %36 = vector.broadcast %cst_16 : f32 to vector<128x128xf32>
    %37 = arith.addf %30, %36 : vector<128x128xf32>
    %cst_17 = arith.constant 3.125000e-02 : f32
    %38 = vector.broadcast %cst_17 : f32 to vector<128x128xf32>
    %39 = arith.mulf %37, %38 : vector<128x128xf32>
    %40 = math.floor %39 : vector<128x128xf32>
    %41 = arith.cmpf oeq, %35, %40 : vector<128x128xf32>
    %cst_18 = arith.constant 0.000000e+00 : f32
    %42 = vector.broadcast %cst_18 : f32 to vector<8x128xf32>
    %43 = arith.maximumf %24, %42 : vector<8x128xf32>
    %cst_19 = arith.constant dense<0.000000e+00> : vector<128xf32>
    %44 = vector.multi_reduction <add>, %43, %cst_19 [0] : vector<8x128xf32> to vector<128xf32>
    %45 = vector.shape_cast %44 : vector<128xf32> to vector<1x128xf32>
    %cst_20 = arith.constant 8.000000e+00 : f32
    %46 = vector.broadcast %cst_20 : f32 to vector<1x128xf32>
    %47 = arith.divf %45, %46 : vector<1x128xf32>
    %48 = vector.broadcast %47 : vector<1x128xf32> to vector<8x128xf32>
    %49 = arith.subf %43, %48 : vector<8x128xf32>
    %50 = arith.mulf %49, %49 : vector<8x128xf32>
    %cst_21 = arith.constant dense<0.000000e+00> : vector<128xf32>
    %51 = vector.multi_reduction <add>, %50, %cst_21 [0] : vector<8x128xf32> to vector<128xf32>
    %52 = vector.shape_cast %51 : vector<128xf32> to vector<1x128xf32>
    %cst_22 = arith.constant 8.000000e+00 : f32
    %53 = vector.broadcast %cst_22 : f32 to vector<1x128xf32>
    %54 = arith.divf %52, %53 : vector<1x128xf32>
    %cst_23 = arith.constant 9.99999974E-6 : f32
    %55 = vector.broadcast %cst_23 : f32 to vector<1x128xf32>
    %56 = arith.addf %54, %55 : vector<1x128xf32>
    %57 = math.rsqrt %56 : vector<1x128xf32>
    %58 = vector.broadcast %57 : vector<1x128xf32> to vector<8x128xf32>
    %59 = arith.mulf %49, %58 : vector<8x128xf32>
    %60 = vector.extract_strided_slice %25 {offsets = [0, 0], sizes = [1, 128], strides = [1, 1]} : vector<2x128xf32> to vector<1x128xf32>
    %61 = vector.broadcast %60 : vector<1x128xf32> to vector<8x128xf32>
    %62 = arith.mulf %59, %61 : vector<8x128xf32>
    %63 = vector.extract_strided_slice %26 {offsets = [0, 0], sizes = [1, 128], strides = [1, 1]} : vector<2x128xf32> to vector<1x128xf32>
    %64 = vector.broadcast %63 : vector<1x128xf32> to vector<8x128xf32>
    %65 = arith.addf %62, %64 : vector<8x128xf32>
    %c0_24 = arith.constant 0 : index
    %c0_25 = arith.constant 0 : index
    %c0_26 = arith.constant 0 : index
    %66 = vector.load %arg3[%c0_24, %c0_25, %c0_26] : memref<2x128x32xf32, #tpu.memory_space<vmem>>, vector<1x128x32xf32>
    %67 = vector.shape_cast %66 : vector<1x128x32xf32> to vector<128x32xf32>
    %68 = tpu.concatenate %67, %67, %67, %67 in 1 : vector<128x32xf32>, vector<128x32xf32>, vector<128x32xf32>, vector<128x32xf32> -> vector<128x128xf32>
    %cst_27 = arith.constant 0.000000e+00 : f32
    %69 = vector.broadcast %cst_27 : f32 to vector<128x128xf32>
    %70 = arith.select %41, %68, %69 : vector<128x128xi1>, vector<128x128xf32>
    %cst_28 = arith.constant dense<0.000000e+00> : vector<8x128xf32>
    %71 = tpu.matmul %65, %70, %cst_28 {dimension_numbers = #tpu.dot_dimension_numbers<[1], [0], [0], [1], [0, 0, 1, 1], [], []>} : vector<8x128xf32>, vector<128x128xf32>, vector<8x128xf32> -> vector<8x128xf32>
    %72 = vector.extract_strided_slice %0 {offsets = [1, 0], sizes = [1, 128], strides = [1, 1]} : vector<3x128xf32> to vector<1x128xf32>
    %73 = vector.broadcast %72 : vector<1x128xf32> to vector<8x128xf32>
    %74 = arith.addf %71, %73 : vector<8x128xf32>
    %cst_29 = arith.constant 0.000000e+00 : f32
    %75 = vector.broadcast %cst_29 : f32 to vector<8x128xf32>
    %76 = arith.maximumf %74, %75 : vector<8x128xf32>
    %cst_30 = arith.constant dense<0.000000e+00> : vector<128xf32>
    %77 = vector.multi_reduction <add>, %76, %cst_30 [0] : vector<8x128xf32> to vector<128xf32>
    %78 = vector.shape_cast %77 : vector<128xf32> to vector<1x128xf32>
    %cst_31 = arith.constant 8.000000e+00 : f32
    %79 = vector.broadcast %cst_31 : f32 to vector<1x128xf32>
    %80 = arith.divf %78, %79 : vector<1x128xf32>
    %81 = vector.broadcast %80 : vector<1x128xf32> to vector<8x128xf32>
    %82 = arith.subf %76, %81 : vector<8x128xf32>
    %83 = arith.mulf %82, %82 : vector<8x128xf32>
    %cst_32 = arith.constant dense<0.000000e+00> : vector<128xf32>
    %84 = vector.multi_reduction <add>, %83, %cst_32 [0] : vector<8x128xf32> to vector<128xf32>
    %85 = vector.shape_cast %84 : vector<128xf32> to vector<1x128xf32>
    %cst_33 = arith.constant 8.000000e+00 : f32
    %86 = vector.broadcast %cst_33 : f32 to vector<1x128xf32>
    %87 = arith.divf %85, %86 : vector<1x128xf32>
    %cst_34 = arith.constant 9.99999974E-6 : f32
    %88 = vector.broadcast %cst_34 : f32 to vector<1x128xf32>
    %89 = arith.addf %87, %88 : vector<1x128xf32>
    %90 = math.rsqrt %89 : vector<1x128xf32>
    %91 = vector.broadcast %90 : vector<1x128xf32> to vector<8x128xf32>
    %92 = arith.mulf %82, %91 : vector<8x128xf32>
    %93 = vector.extract_strided_slice %25 {offsets = [1, 0], sizes = [1, 128], strides = [1, 1]} : vector<2x128xf32> to vector<1x128xf32>
    %94 = vector.broadcast %93 : vector<1x128xf32> to vector<8x128xf32>
    %95 = arith.mulf %92, %94 : vector<8x128xf32>
    %96 = vector.extract_strided_slice %26 {offsets = [1, 0], sizes = [1, 128], strides = [1, 1]} : vector<2x128xf32> to vector<1x128xf32>
    %97 = vector.broadcast %96 : vector<1x128xf32> to vector<8x128xf32>
    %98 = arith.addf %95, %97 : vector<8x128xf32>
    %c1 = arith.constant 1 : index
    %c0_35 = arith.constant 0 : index
    %c0_36 = arith.constant 0 : index
    %99 = vector.load %arg3[%c1, %c0_35, %c0_36] : memref<2x128x32xf32, #tpu.memory_space<vmem>>, vector<1x128x32xf32>
    %100 = vector.shape_cast %99 : vector<1x128x32xf32> to vector<128x32xf32>
    %101 = tpu.concatenate %100, %100, %100, %100 in 1 : vector<128x32xf32>, vector<128x32xf32>, vector<128x32xf32>, vector<128x32xf32> -> vector<128x128xf32>
    %cst_37 = arith.constant 0.000000e+00 : f32
    %102 = vector.broadcast %cst_37 : f32 to vector<128x128xf32>
    %103 = arith.select %41, %101, %102 : vector<128x128xi1>, vector<128x128xf32>
    %cst_38 = arith.constant dense<0.000000e+00> : vector<8x128xf32>
    %104 = tpu.matmul %98, %103, %cst_38 {dimension_numbers = #tpu.dot_dimension_numbers<[1], [0], [0], [1], [0, 0, 1, 1], [], []>} : vector<8x128xf32>, vector<128x128xf32>, vector<8x128xf32> -> vector<8x128xf32>
    %105 = vector.extract_strided_slice %0 {offsets = [2, 0], sizes = [1, 128], strides = [1, 1]} : vector<3x128xf32> to vector<1x128xf32>
    %106 = vector.broadcast %105 : vector<1x128xf32> to vector<8x128xf32>
    %107 = arith.addf %104, %106 : vector<8x128xf32>
    %c0_39 = arith.constant 0 : index
    %c0_40 = arith.constant 0 : index
    %108 = vector.load %arg7[%c0_39, %c0_40] : memref<8x128xf32, #tpu.memory_space<vmem>>, vector<8x128xf32>
    tpu.vector_store %arg7[%c0_39, %c0_40], %107 {strides = array<i32>} : memref<8x128xf32, #tpu.memory_space<vmem>>, vector<8x128xf32>,
    return
  }
  func.func @transform_0(%arg0: i32) -> (i32, i32) {
    %c0_i32 = arith.constant 0 : i32
    %c0_i32_0 = arith.constant 0 : i32
    return %c0_i32, %arg0 : i32, i32
  }
  func.func @transform_1(%arg0: i32) -> (i32, i32) {
    %c0_i32 = arith.constant 0 : i32
    %c0_i32_0 = arith.constant 0 : i32
    return %arg0, %c0_i32 : i32, i32
  }
  func.func @transform_2(%arg0: i32) -> (i32, i32, i32) {
    %c0_i32 = arith.constant 0 : i32
    %c0_i32_0 = arith.constant 0 : i32
    %c0_i32_1 = arith.constant 0 : i32
    return %c0_i32, %arg0, %c0_i32_0 : i32, i32, i32
  }
  func.func @transform_3(%arg0: i32) -> (i32, i32) {
    %c0_i32 = arith.constant 0 : i32
    %c0_i32_0 = arith.constant 0 : i32
    return %c0_i32, %arg0 : i32, i32
  }
  func.func @transform_4(%arg0: i32) -> (i32, i32) {
    %c0_i32 = arith.constant 0 : i32
    %c0_i32_0 = arith.constant 0 : i32
    return %c0_i32, %arg0 : i32, i32
  }
  func.func @transform_5(%arg0: i32) -> (i32, i32) {
    %c0_i32 = arith.constant 0 : i32
    %c0_i32_0 = arith.constant 0 : i32
    return %c0_i32, %arg0 : i32, i32
  }
  func.func @transform_6(%arg0: i32) -> (i32, i32) {
    %c0_i32 = arith.constant 0 : i32
    %c0_i32_0 = arith.constant 0 : i32
    return %c0_i32, %arg0 : i32, i32
  }
}

</mosaic_0001>

<llo_original>
// kernel: tpu_custom_call.1
$region0: #{tpu_custom_call.1}
  #allocation0 [shape = 'u32[]', space=smem, size = 0x4, offset = 0x4, fixed_abs, tag = 'smem constant byte address 0x4 - core index']
  #allocation1 [shape = 'u32[72,128]{1,0:T(1,128)}', space=vmem, size = 0x9000, scoped, tag = 'internal scratch']
  %s0 = inlined_call_operand.vmem [shape: f32[8,64], index: 0, kind: input, shape index: {}]
  %s1 = inlined_call_operand.vmem [shape: f32[64,32], index: 1, kind: input, shape index: {}]
  %s2 = inlined_call_operand.vmem [shape: f32[2,128,32], index: 2, kind: input, shape index: {}]
  %s3 = inlined_call_operand.vmem [shape: f32[2,128], index: 3, kind: input, shape index: {}]
  %s4 = inlined_call_operand.vmem [shape: f32[2,128], index: 4, kind: input, shape index: {}]
  %s5 = inlined_call_operand.vmem [shape: f32[3,128], index: 5, kind: input, shape index: {}]
  %s6 = inlined_call_operand.hbm [shape: f32[8,128], index: 6, kind: output, shape index: {}]
  %s7 = sld [smem:[#allocation0]]
  $region34: #{tpu_custom_call.1} parent=0
    _
  %s9 = ssub.s32 1, %s7
  %s10 = scalar_select 0, %s9, %s7
  $region1: #{tpu_custom_call.1} parent=0
    #allocation2 [shape = 'u8[4096]{0}', space=vmem, size = 0x1000, scoped, tag = 'output window, operand 0, single buffered']
    #allocation3 [shape = 's32[1]{0}', space=sflag, size = 0x4, scoped, tag = 'scoped memory for tpu_custom_call.1']
    %11 = vsyncpa [#allocation3], 0
    // Predicated region
    $region2: #{tpu_custom_call.1} parent=1 // pred_check
      _
    $region3: #{tpu_custom_call.1} parent=1 // pred_check_branch
      %13 = sbr.rel (0) target = $region5
    $region4: #{tpu_custom_call.1} parent=1 // pred_region
      _
    $region5: #{tpu_custom_call.1} parent=1 // pred_fallthru
      _
    // Predicated region
    $region6: #{tpu_custom_call.1} parent=1 // pred_check
      _
    $region7: #{tpu_custom_call.1} parent=1 // pred_check_branch
      %15 = sbr.rel (0) target = $region9
    $region8: #{tpu_custom_call.1} parent=1 // pred_region
      _
    $region9: #{tpu_custom_call.1} parent=1 // pred_fallthru
      _
    // Predicated region
    $region10: #{tpu_custom_call.1} parent=1 // pred_check
      _
    $region11: #{tpu_custom_call.1} parent=1 // pred_check_branch
      %17 = sbr.rel (0) target = $region13
    $region12: #{tpu_custom_call.1} parent=1 // pred_region
      _
    $region13: #{tpu_custom_call.1} parent=1 // pred_fallthru
      _
    // Predicated region
    $region14: #{tpu_custom_call.1} parent=1 // pred_check
      _
    $region15: #{tpu_custom_call.1} parent=1 // pred_check_branch
      %19 = sbr.rel (0) target = $region17
    $region16: #{tpu_custom_call.1} parent=1 // pred_region
      _
    $region17: #{tpu_custom_call.1} parent=1 // pred_fallthru
      _
    // Predicated region
    $region18: #{tpu_custom_call.1} parent=1 // pred_check
      _
    $region19: #{tpu_custom_call.1} parent=1 // pred_check_branch
      %21 = sbr.rel (0) target = $region21
    $region20: #{tpu_custom_call.1} parent=1 // pred_region
      _
    $region21: #{tpu_custom_call.1} parent=1 // pred_fallthru
      _
    // Predicated region
    $region22: #{tpu_custom_call.1} parent=1 // pred_check
      _
    $region23: #{tpu_custom_call.1} parent=1 // pred_check_branch
      %23 = sbr.rel (0) target = $region25
    $region24: #{tpu_custom_call.1} parent=1 // pred_region
      _
    $region25: #{tpu_custom_call.1} parent=1 // pred_fallthru
      _
    %v24 = vld [vmem:[%s5] sm:$0x7]
    %v25 = vld [vmem:[%s0] sm:$0xff]
    %v26 = vlaneseq
    %v27 = vshrl.u32 %v26, 7
    %v28 = vadd.s32 %v27, 8
    %v29 = vadd.s32 %v27, 16
    %v30 = vadd.s32 %v27, 24
    %v31 = vadd.s32 %v27, 32
    %v32 = vadd.s32 %v27, 40
    %v33 = vadd.s32 %v27, 48
    %v34 = vadd.s32 %v27, 56
    %v35 = vcvt.s32.f32 %v27
    %v36 = vcvt.s32.f32 %v28
    %v37 = vcvt.s32.f32 %v29
    %v38 = vcvt.s32.f32 %v30
    %v39 = vcvt.s32.f32 %v31
    %v40 = vcvt.s32.f32 %v32
    %v41 = vcvt.s32.f32 %v33
    %v42 = vcvt.s32.f32 %v34
    %v43 = vlaneseq
    %v44 = vand.u32 %v43, 127
    %v45 = vcvt.s32.f32 %v44
    %v46 = vadd.f32 %v35, 0.5
    %v47 = vadd.f32 %v36, 0.5
    %v48 = vadd.f32 %v37, 0.5
    %v49 = vadd.f32 %v38, 0.5
    %v50 = vadd.f32 %v39, 0.5
    %v51 = vadd.f32 %v40, 0.5
    %v52 = vadd.f32 %v41, 0.5
    %v53 = vadd.f32 %v42, 0.5
    %v54 = vmul.f32 %v46, 0.0625
    %v55 = vmul.f32 %v47, 0.0625
    %v56 = vmul.f32 %v48, 0.0625
    %v57 = vmul.f32 %v49, 0.0625
    %v58 = vmul.f32 %v50, 0.0625
    %v59 = vmul.f32 %v51, 0.0625
    %v60 = vmul.f32 %v52, 0.0625
    %v61 = vmul.f32 %v53, 0.0625
    %v62 = vfloor.f32 %v54
    %v63 = vfloor.f32 %v55
    %v64 = vfloor.f32 %v56
    %v65 = vfloor.f32 %v57
    %v66 = vfloor.f32 %v58
    %v67 = vfloor.f32 %v59
    %v68 = vfloor.f32 %v60
    %v69 = vfloor.f32 %v61
    %v70 = vadd.f32 %v45, 0.5
    %v71 = vmul.f32 %v70, 0.03125
    %v72 = vfloor.f32 %v71
    %vm73 = vcmp.eq.f32.partialorder %v62, %v72
    %vm74 = vcmp.eq.f32.partialorder %v63, %v72
    %vm75 = vcmp.eq.f32.partialorder %v64, %v72
    %vm76 = vcmp.eq.f32.partialorder %v65, %v72
    %vm77 = vcmp.eq.f32.partialorder %v66, %v72
    %vm78 = vcmp.eq.f32.partialorder %v67, %v72
    %vm79 = vcmp.eq.f32.partialorder %v68, %v72
    %vm80 = vcmp.eq.f32.partialorder %v69, %v72
    %v81 = vld [vmem:[%s1] sm:$0xff]
    %v82 = vld [vmem:[%s1 + $0x8] sm:$0xff]
    %v83 = vld [vmem:[%s1 + $0x10] sm:$0xff]
    %v84 = vld [vmem:[%s1 + $0x18] sm:$0xff]
    %v85 = vld [vmem:[%s1 + $0x20] sm:$0xff]
    %v86 = vld [vmem:[%s1 + $0x28] sm:$0xff]
    %v87 = vld [vmem:[%s1 + $0x30] sm:$0xff]
    %v88 = vld [vmem:[%s1 + $0x38] sm:$0xff]
    %97 = vrot.lane.b32.xlu0 %v81, 32
    %v98 = vpop.permute.xlu0 %97
    %99 = vrot.lane.b32.xlu0 %v82, 32
    %v100 = vpop.permute.xlu0 %99
    %101 = vrot.lane.b32.xlu0 %v83, 32
    %v102 = vpop.permute.xlu0 %101
    %103 = vrot.lane.b32.xlu0 %v84, 32
    %v104 = vpop.permute.xlu0 %103
    %105 = vrot.lane.b32.xlu0 %v85, 32
    %v106 = vpop.permute.xlu0 %105
    %107 = vrot.lane.b32.xlu0 %v86, 32
    %v108 = vpop.permute.xlu0 %107
    %109 = vrot.lane.b32.xlu0 %v87, 32
    %v110 = vpop.permute.xlu0 %109
    %111 = vrot.lane.b32.xlu0 %v88, 32
    %v112 = vpop.permute.xlu0 %111
    %121 = vrot.lane.b32.xlu0 %v81, 64
    %v122 = vpop.permute.xlu0 %121
    %123 = vrot.lane.b32.xlu0 %v82, 64
    %v124 = vpop.permute.xlu0 %123
    %125 = vrot.lane.b32.xlu0 %v83, 64
    %v126 = vpop.permute.xlu0 %125
    %127 = vrot.lane.b32.xlu0 %v84, 64
    %v128 = vpop.permute.xlu0 %127
    %129 = vrot.lane.b32.xlu0 %v85, 64
    %v130 = vpop.permute.xlu0 %129
    %131 = vrot.lane.b32.xlu0 %v86, 64
    %v132 = vpop.permute.xlu0 %131
    %133 = vrot.lane.b32.xlu0 %v87, 64
    %v134 = vpop.permute.xlu0 %133
    %135 = vrot.lane.b32.xlu0 %v88, 64
    %v136 = vpop.permute.xlu0 %135
    %145 = vrot.lane.b32.xlu0 %v81, 96
    %v146 = vpop.permute.xlu0 %145
    %147 = vrot.lane.b32.xlu0 %v82, 96
    %v148 = vpop.permute.xlu0 %147
    %149 = vrot.lane.b32.xlu0 %v83, 96
    %v150 = vpop.permute.xlu0 %149
    %151 = vrot.lane.b32.xlu0 %v84, 96
    %v152 = vpop.permute.xlu0 %151
    %153 = vrot.lane.b32.xlu0 %v85, 96
    %v154 = vpop.permute.xlu0 %153
    %155 = vrot.lane.b32.xlu0 %v86, 96
    %v156 = vpop.permute.xlu0 %155
    %157 = vrot.lane.b32.xlu0 %v87, 96
    %v158 = vpop.permute.xlu0 %157
    %159 = vrot.lane.b32.xlu0 %v88, 96
    %v160 = vpop.permute.xlu0 %159
    %vm169 = vcmask 261120
    %v170 = vsel %vm169, %v81, %v98
    %v171 = vsel %vm169, %v82, %v100
    %v172 = vsel %vm169, %v83, %v102
    %v173 = vsel %vm169, %v84, %v104
    %v174 = vsel %vm169, %v85, %v106
    %v175 = vsel %vm169, %v86, %v108
    %v176 = vsel %vm169, %v87, %v110
    %v177 = vsel %vm169, %v88, %v112
    %vm178 = vcmask 523264
    %v179 = vsel %vm178, %v170, %v122
    %v180 = vsel %vm178, %v171, %v124
    %v181 = vsel %vm178, %v172, %v126
    %v182 = vsel %vm178, %v173, %v128
    %v183 = vsel %vm178, %v174, %v130
    %v184 = vsel %vm178, %v175, %v132
    %v185 = vsel %vm178, %v176, %v134
    %v186 = vsel %vm178, %v177, %v136
    %vm187 = vcmask 785408
    %v188 = vsel %vm187, %v179, %v146
    %v189 = vsel %vm187, %v180, %v148
    %v190 = vsel %vm187, %v181, %v150
    %v191 = vsel %vm187, %v182, %v152
    %v192 = vsel %vm187, %v183, %v154
    %v193 = vsel %vm187, %v184, %v156
    %v194 = vsel %vm187, %v185, %v158
    %v195 = vsel %vm187, %v186, %v160
    %v196 = vsel %vm73, %v188, 0.0
    %v197 = vsel %vm74, %v189, 0.0
    %v198 = vsel %vm75, %v190, 0.0
    %v199 = vsel %vm76, %v191, 0.0
    %v200 = vsel %vm77, %v192, 0.0
    %v201 = vsel %vm78, %v193, 0.0
    %v202 = vsel %vm79, %v194, 0.0
    %v203 = vsel %vm80, %v195, 0.0
    %v204 = vperm.slane %v24, 0
    %v206 = vsel %vm178, %v25, 0
    %208 = vmatpush.msra.mxu0 0.0
    %209 = vmatpush.msra.mxu0 0.0
    %210 = vmatpush.msra.mxu0 0.0
    %211 = vmatpush.msra.mxu0 0.0
    %212 = vmatpush.msra.mxu0 0.0
    %213 = vmatpush.msra.mxu0 0.0
    %214 = vmatpush.msra.mxu0 0.0
    %215 = vmatpush.msra.mxu0 0.0
    %216 = vmatpush.msra.mxu0 %v203
    %217 = vmatpush.msra.mxu0 %v202
    %218 = vmatpush.msra.mxu0 %v201
    %219 = vmatpush.msra.mxu0 %v200
    %220 = vmatpush.msra.mxu0 %v199
    %221 = vmatpush.msra.mxu0 %v198
    %222 = vmatpush.msra.mxu0 %v197
    %223 = vmatpush.msra.mxu0 %v196
    %224 = vmatmul.f32.gmra.mxu0 %v206
    %v225 = vpop.f32.mrf.mxu0
    %v226 = vadd.f32 %v204, %v225
    %227 = vdwg.mxu0
    %v228 = vld [vmem:[%s3] sm:$0x3]
    %v229 = vld [vmem:[%s4] sm:$0x3]
    %v230 = vadd.s32 %v27, 64
    %v231 = vadd.s32 %v27, 72
    %v232 = vadd.s32 %v27, 80
    %v233 = vadd.s32 %v27, 88
    %v234 = vadd.s32 %v27, 96
    %v235 = vadd.s32 %v27, 104
    %v236 = vadd.s32 %v27, 112
    %v237 = vadd.s32 %v27, 120
    %v238 = vcvt.s32.f32 %v230
    %v239 = vcvt.s32.f32 %v231
    %v240 = vcvt.s32.f32 %v232
    %v241 = vcvt.s32.f32 %v233
    %v242 = vcvt.s32.f32 %v234
    %v243 = vcvt.s32.f32 %v235
    %v244 = vcvt.s32.f32 %v236
    %v245 = vcvt.s32.f32 %v237
    %v246 = vadd.f32 %v238, 0.5
    %v247 = vadd.f32 %v239, 0.5
    %v248 = vadd.f32 %v240, 0.5
    %v249 = vadd.f32 %v241, 0.5
    %v250 = vadd.f32 %v242, 0.5
    %v251 = vadd.f32 %v243, 0.5
    %v252 = vadd.f32 %v244, 0.5
    %v253 = vadd.f32 %v245, 0.5
    %v254 = vmul.f32 %v46, 0.03125
    %v255 = vmul.f32 %v47, 0.03125
    %v256 = vmul.f32 %v48, 0.03125
    %v257 = vmul.f32 %v49, 0.03125
    %v258 = vmul.f32 %v50, 0.03125
    %v259 = vmul.f32 %v51, 0.03125
    %v260 = vmul.f32 %v52, 0.03125
    %v261 = vmul.f32 %v53, 0.03125
    %v262 = vmul.f32 %v246, 0.03125
    %v263 = vmul.f32 %v247, 0.03125
    %v264 = vmul.f32 %v248, 0.03125
    %v265 = vmul.f32 %v249, 0.03125
    %v266 = vmul.f32 %v250, 0.03125
    %v267 = vmul.f32 %v251, 0.03125
    %v268 = vmul.f32 %v252, 0.03125
    %v269 = vmul.f32 %v253, 0.03125
    %v270 = vfloor.f32 %v254
    %v271 = vfloor.f32 %v255
    %v272 = vfloor.f32 %v256
    %v273 = vfloor.f32 %v257
    %v274 = vfloor.f32 %v258
    %v275 = vfloor.f32 %v259
    %v276 = vfloor.f32 %v260
    %v277 = vfloor.f32 %v261
    %v278 = vfloor.f32 %v262
    %v279 = vfloor.f32 %v263
    %v280 = vfloor.f32 %v264
    %v281 = vfloor.f32 %v265
    %v282 = vfloor.f32 %v266
    %v283 = vfloor.f32 %v267
    %v284 = vfloor.f32 %v268
    %v285 = vfloor.f32 %v269
    %vm286 = vcmp.eq.f32.partialorder %v270, %v72
    %vm287 = vcmp.eq.f32.partialorder %v271, %v72
    %vm288 = vcmp.eq.f32.partialorder %v272, %v72
    %vm289 = vcmp.eq.f32.partialorder %v273, %v72
    %vm290 = vcmp.eq.f32.partialorder %v274, %v72
    %vm291 = vcmp.eq.f32.partialorder %v275, %v72
    %vm292 = vcmp.eq.f32.partialorder %v276, %v72
    %vm293 = vcmp.eq.f32.partialorder %v277, %v72
    %vm294 = vcmp.eq.f32.partialorder %v278, %v72
    %vm295 = vcmp.eq.f32.partialorder %v279, %v72
    %vm296 = vcmp.eq.f32.partialorder %v280, %v72
    %vm297 = vcmp.eq.f32.partialorder %v281, %v72
    %vm298 = vcmp.eq.f32.partialorder %v282, %v72
    %vm299 = vcmp.eq.f32.partialorder %v283, %v72
    %vm300 = vcmp.eq.f32.partialorder %v284, %v72
    %vm301 = vcmp.eq.f32.partialorder %v285, %v72
    %v302 = vmax.f32 %v226, 0.0
    %v303 = vrot.slane %v302, 4
    %v304 = vadd.f32 %v302, %v303
    %v305 = vrot.slane %v304, 2
    %v306 = vadd.f32 %v304, %v305
    %v307 = vrot.slane %v306, 1
    %v308 = vadd.f32 %v306, %v307
    %v309 = vrcp.pop 8.0
    %v310 = vmul.f32 8.0, %v309
    %v311 = vsub.f32 1.0, %v310
    %v312 = vmul.f32 %v309, %v311
    %v313 = vadd.f32 %v309, %v312
    %vm314 = vweird.f32 %v309
    %v315 = vsel %vm314, %v309, %v313
    %v316 = vmul.f32 %v308, %v315
    %v317 = vsub.f32 %v302, %v316
    %v318 = vmul.f32 %v317, %v317
    %v319 = vrot.slane %v318, 4
    %v320 = vadd.f32 %v318, %v319
    %v321 = vrot.slane %v320, 2
    %v322 = vadd.f32 %v320, %v321
    %v323 = vrot.slane %v322, 1
    %v324 = vadd.f32 %v322, %v323
    %v325 = vmul.f32 %v324, %v315
    %v326 = vadd.f32 %v325, 1e-05
    %v327 = vrsqrt.pop %v326
    %v328 = vmul.f32 %v327, %v326
    %v329 = vmul.f32 %v328, %v327
    %v330 = vmul.f32 0.5, %v329
    %v331 = vsub.f32 1.5, %v330
    %v332 = vmul.f32 %v327, %v331
    %vm333 = vweird.f32 %v326
    %vm334 = vweird.f32 %v327
    %vm335 = vmor %vm333, %vm334
    %v336 = vsel %vm335, %v327, %v332
    %v337 = vmul.f32 %v317, %v336
    %v338 = vperm.slane %v228, 0
    %v339 = vmul.f32 %v337, %v338
    %v340 = vperm.slane %v229, 0
    %v341 = vadd.f32 %v339, %v340
    %v342 = vld [vmem:[%s2] sm:$0xff]
    %v343 = vld [vmem:[%s2 + $0x8] sm:$0xff]
    %v344 = vld [vmem:[%s2 + $0x10] sm:$0xff]
    %v345 = vld [vmem:[%s2 + $0x18] sm:$0xff]
    %v346 = vld [vmem:[%s2 + $0x20] sm:$0xff]
    %v347 = vld [vmem:[%s2 + $0x28] sm:$0xff]
    %v348 = vld [vmem:[%s2 + $0x30] sm:$0xff]
    %v349 = vld [vmem:[%s2 + $0x38] sm:$0xff]
    %v350 = vld [vmem:[%s2 + $0x40] sm:$0xff]
    %v351 = vld [vmem:[%s2 + $0x48] sm:$0xff]
    %v352 = vld [vmem:[%s2 + $0x50] sm:$0xff]
    %v353 = vld [vmem:[%s2 + $0x58] sm:$0xff]
    %v354 = vld [vmem:[%s2 + $0x60] sm:$0xff]
    %v355 = vld [vmem:[%s2 + $0x68] sm:$0xff]
    %v356 = vld [vmem:[%s2 + $0x70] sm:$0xff]
    %v357 = vld [vmem:[%s2 + $0x78] sm:$0xff]
    %374 = vrot.lane.b32.xlu0 %v342, 32
    %v375 = vpop.permute.xlu0 %374
    %376 = vrot.lane.b32.xlu0 %v343, 32
    %v377 = vpop.permute.xlu0 %376
    %378 = vrot.lane.b32.xlu0 %v344, 32
    %v379 = vpop.permute.xlu0 %378
    %380 = vrot.lane.b32.xlu0 %v345, 32
    %v381 = vpop.permute.xlu0 %380
    %382 = vrot.lane.b32.xlu0 %v346, 32
    %v383 = vpop.permute.xlu0 %382
    %384 = vrot.lane.b32.xlu0 %v347, 32
    %v385 = vpop.permute.xlu0 %384
    %386 = vrot.lane.b32.xlu0 %v348, 32
    %v387 = vpop.permute.xlu0 %386
    %388 = vrot.lane.b32.xlu0 %v349, 32
    %v389 = vpop.permute.xlu0 %388
    %390 = vrot.lane.b32.xlu0 %v350, 32
    %v391 = vpop.permute.xlu0 %390
    %392 = vrot.lane.b32.xlu0 %v351, 32
    %v393 = vpop.permute.xlu0 %392
    %394 = vrot.lane.b32.xlu0 %v352, 32
    %v395 = vpop.permute.xlu0 %394
    %396 = vrot.lane.b32.xlu0 %v353, 32
    %v397 = vpop.permute.xlu0 %396
    %398 = vrot.lane.b32.xlu0 %v354, 32
    %v399 = vpop.permute.xlu0 %398
    %400 = vrot.lane.b32.xlu0 %v355, 32
    %v401 = vpop.permute.xlu0 %400
    %402 = vrot.lane.b32.xlu0 %v356, 32
    %v403 = vpop.permute.xlu0 %402
    %404 = vrot.lane.b32.xlu0 %v357, 32
    %v405 = vpop.permute.xlu0 %404
    %422 = vrot.lane.b32.xlu0 %v342, 64
    %v423 = vpop.permute.xlu0 %422
    %424 = vrot.lane.b32.xlu0 %v343, 64
    %v425 = vpop.permute.xlu0 %424
    %426 = vrot.lane.b32.xlu0 %v344, 64
    %v427 = vpop.permute.xlu0 %426
    %428 = vrot.lane.b32.xlu0 %v345, 64
    %v429 = vpop.permute.xlu0 %428
    %430 = vrot.lane.b32.xlu0 %v346, 64
    %v431 = vpop.permute.xlu0 %430
    %432 = vrot.lane.b32.xlu0 %v347, 64
    %v433 = vpop.permute.xlu0 %432
    %434 = vrot.lane.b32.xlu0 %v348, 64
    %v435 = vpop.permute.xlu0 %434
    %436 = vrot.lane.b32.xlu0 %v349, 64
    %v437 = vpop.permute.xlu0 %436
    %438 = vrot.lane.b32.xlu0 %v350, 64
    %v439 = vpop.permute.xlu0 %438
    %440 = vrot.lane.b32.xlu0 %v351, 64
    %v441 = vpop.permute.xlu0 %440
    %442 = vrot.lane.b32.xlu0 %v352, 64
    %v443 = vpop.permute.xlu0 %442
    %444 = vrot.lane.b32.xlu0 %v353, 64
    %v445 = vpop.permute.xlu0 %444
    %446 = vrot.lane.b32.xlu0 %v354, 64
    %v447 = vpop.permute.xlu0 %446
    %448 = vrot.lane.b32.xlu0 %v355, 64
    %v449 = vpop.permute.xlu0 %448
    %450 = vrot.lane.b32.xlu0 %v356, 64
    %v451 = vpop.permute.xlu0 %450
    %452 = vrot.lane.b32.xlu0 %v357, 64
    %v453 = vpop.permute.xlu0 %452
    %470 = vrot.lane.b32.xlu0 %v342, 96
    %v471 = vpop.permute.xlu0 %470
    %472 = vrot.lane.b32.xlu0 %v343, 96
    %v473 = vpop.permute.xlu0 %472
    %474 = vrot.lane.b32.xlu0 %v344, 96
    %v475 = vpop.permute.xlu0 %474
    %476 = vrot.lane.b32.xlu0 %v345, 96
    %v477 = vpop.permute.xlu0 %476
    %478 = vrot.lane.b32.xlu0 %v346, 96
    %v479 = vpop.permute.xlu0 %478
    %480 = vrot.lane.b32.xlu0 %v347, 96
    %v481 = vpop.permute.xlu0 %480
    %482 = vrot.lane.b32.xlu0 %v348, 96
    %v483 = vpop.permute.xlu0 %482
    %484 = vrot.lane.b32.xlu0 %v349, 96
    %v485 = vpop.permute.xlu0 %484
    %486 = vrot.lane.b32.xlu0 %v350, 96
    %v487 = vpop.permute.xlu0 %486
    %488 = vrot.lane.b32.xlu0 %v351, 96
    %v489 = vpop.permute.xlu0 %488
    %490 = vrot.lane.b32.xlu0 %v352, 96
    %v491 = vpop.permute.xlu0 %490
    %492 = vrot.lane.b32.xlu0 %v353, 96
    %v493 = vpop.permute.xlu0 %492
    %494 = vrot.lane.b32.xlu0 %v354, 96
    %v495 = vpop.permute.xlu0 %494
    %496 = vrot.lane.b32.xlu0 %v355, 96
    %v497 = vpop.permute.xlu0 %496
    %498 = vrot.lane.b32.xlu0 %v356, 96
    %v499 = vpop.permute.xlu0 %498
    %500 = vrot.lane.b32.xlu0 %v357, 96
    %v501 = vpop.permute.xlu0 %500
    %v518 = vsel %vm169, %v342, %v375
    %v519 = vsel %vm169, %v343, %v377
    %v520 = vsel %vm169, %v344, %v379
    %v521 = vsel %vm169, %v345, %v381
    %v522 = vsel %vm169, %v346, %v383
    %v523 = vsel %vm169, %v347, %v385
    %v524 = vsel %vm169, %v348, %v387
    %v525 = vsel %vm169, %v349, %v389
    %v526 = vsel %vm169, %v350, %v391
    %v527 = vsel %vm169, %v351, %v393
    %v528 = vsel %vm169, %v352, %v395
    %v529 = vsel %vm169, %v353, %v397
    %v530 = vsel %vm169, %v354, %v399
    %v531 = vsel %vm169, %v355, %v401
    %v532 = vsel %vm169, %v356, %v403
    %v533 = vsel %vm169, %v357, %v405
    %v534 = vsel %vm178, %v518, %v423
    %v535 = vsel %vm178, %v519, %v425
    %v536 = vsel %vm178, %v520, %v427
    %v537 = vsel %vm178, %v521, %v429
    %v538 = vsel %vm178, %v522, %v431
    %v539 = vsel %vm178, %v523, %v433
    %v540 = vsel %vm178, %v524, %v435
    %v541 = vsel %vm178, %v525, %v437
    %v542 = vsel %vm178, %v526, %v439
    %v543 = vsel %vm178, %v527, %v441
    %v544 = vsel %vm178, %v528, %v443
    %v545 = vsel %vm178, %v529, %v445
    %v546 = vsel %vm178, %v530, %v447
    %v547 = vsel %vm178, %v531, %v449
    %v548 = vsel %vm178, %v532, %v451
    %v549 = vsel %vm178, %v533, %v453
    %v550 = vsel %vm187, %v534, %v471
    %v551 = vsel %vm187, %v535, %v473
    %v552 = vsel %vm187, %v536, %v475
    %v553 = vsel %vm187, %v537, %v477
    %v554 = vsel %vm187, %v538, %v479
    %v555 = vsel %vm187, %v539, %v481
    %v556 = vsel %vm187, %v540, %v483
    %v557 = vsel %vm187, %v541, %v485
    %v558 = vsel %vm187, %v542, %v487
    %v559 = vsel %vm187, %v543, %v489
    %v560 = vsel %vm187, %v544, %v491
    %v561 = vsel %vm187, %v545, %v493
    %v562 = vsel %vm187, %v546, %v495
    %v563 = vsel %vm187, %v547, %v497
    %v564 = vsel %vm187, %v548, %v499
    %v565 = vsel %vm187, %v549, %v501
    %v566 = vsel %vm286, %v550, 0.0
    %v567 = vsel %vm287, %v551, 0.0
    %v568 = vsel %vm288, %v552, 0.0
    %v569 = vsel %vm289, %v553, 0.0
    %v570 = vsel %vm290, %v554, 0.0
    %v571 = vsel %vm291, %v555, 0.0
    %v572 = vsel %vm292, %v556, 0.0
    %v573 = vsel %vm293, %v557, 0.0
    %v574 = vsel %vm294, %v558, 0.0
    %v575 = vsel %vm295, %v559, 0.0
    %v576 = vsel %vm296, %v560, 0.0
    %v577 = vsel %vm297, %v561, 0.0
    %v578 = vsel %vm298, %v562, 0.0
    %v579 = vsel %vm299, %v563, 0.0
    %v580 = vsel %vm300, %v564, 0.0
    %v581 = vsel %vm301, %v565, 0.0
    %v582 = vperm.slane %v24, 1
    %583 = vmatpush.msra.mxu0 %v581
    %584 = vmatpush.msra.mxu0 %v580
    %585 = vmatpush.msra.mxu0 %v579
    %586 = vmatpush.msra.mxu0 %v578
    %587 = vmatpush.msra.mxu0 %v577
    %588 = vmatpush.msra.mxu0 %v576
    %589 = vmatpush.msra.mxu0 %v575
    %590 = vmatpush.msra.mxu0 %v574
    %591 = vmatpush.msra.mxu0 %v573
    %592 = vmatpush.msra.mxu0 %v572
    %593 = vmatpush.msra.mxu0 %v571
    %594 = vmatpush.msra.mxu0 %v570
    %595 = vmatpush.msra.mxu0 %v569
    %596 = vmatpush.msra.mxu0 %v568
    %597 = vmatpush.msra.mxu0 %v567
    %598 = vmatpush.msra.mxu0 %v566
    %599 = vmatmul.f32.gmra.mxu0 %v341
    %v600 = vpop.f32.mrf.mxu0
    %v601 = vadd.f32 %v582, %v600
    %602 = vdwg.mxu0
    %v603 = vmax.f32 %v601, 0.0
    %v604 = vrot.slane %v603, 4
    %v605 = vadd.f32 %v603, %v604
    %v606 = vrot.slane %v605, 2
    %v607 = vadd.f32 %v605, %v606
    %v608 = vrot.slane %v607, 1
    %v609 = vadd.f32 %v607, %v608
    %v610 = vmul.f32 %v609, %v315
    %v611 = vsub.f32 %v603, %v610
    %v612 = vmul.f32 %v611, %v611
    %v613 = vrot.slane %v612, 4
    %v614 = vadd.f32 %v612, %v613
    %v615 = vrot.slane %v614, 2
    %v616 = vadd.f32 %v614, %v615
    %v617 = vrot.slane %v616, 1
    %v618 = vadd.f32 %v616, %v617
    %v619 = vmul.f32 %v618, %v315
    %v620 = vadd.f32 %v619, 1e-05
    %v621 = vrsqrt.pop %v620
    %v622 = vmul.f32 %v621, %v620
    %v623 = vmul.f32 %v622, %v621
    %v624 = vmul.f32 0.5, %v623
    %v625 = vsub.f32 1.5, %v624
    %v626 = vmul.f32 %v621, %v625
    %vm627 = vweird.f32 %v620
    %vm628 = vweird.f32 %v621
    %vm629 = vmor %vm627, %vm628
    %v630 = vsel %vm629, %v621, %v626
    %v631 = vmul.f32 %v611, %v630
    %v632 = vperm.slane %v228, 1
    %v633 = vmul.f32 %v631, %v632
    %v634 = vperm.slane %v229, 1
    %v635 = vadd.f32 %v633, %v634
    %s636 = scalar_lea.vmem %s2, 128
    %v637 = vld [vmem:[%s636] sm:$0xff]
    %v638 = vld [vmem:[%s636 + $0x8] sm:$0xff]
    %v639 = vld [vmem:[%s636 + $0x10] sm:$0xff]
    %v640 = vld [vmem:[%s636 + $0x18] sm:$0xff]
    %v641 = vld [vmem:[%s636 + $0x20] sm:$0xff]
    %v642 = vld [vmem:[%s636 + $0x28] sm:$0xff]
    %v643 = vld [vmem:[%s636 + $0x30] sm:$0xff]
    %v644 = vld [vmem:[%s636 + $0x38] sm:$0xff]
    %v645 = vld [vmem:[%s636 + $0x40] sm:$0xff]
    %v646 = vld [vmem:[%s636 + $0x48] sm:$0xff]
    %v647 = vld [vmem:[%s636 + $0x50] sm:$0xff]
    %v648 = vld [vmem:[%s636 + $0x58] sm:$0xff]
    %v649 = vld [vmem:[%s636 + $0x60] sm:$0xff]
    %v650 = vld [vmem:[%s636 + $0x68] sm:$0xff]
    %v651 = vld [vmem:[%s636 + $0x70] sm:$0xff]
    %v652 = vld [vmem:[%s636 + $0x78] sm:$0xff]
    %669 = vrot.lane.b32.xlu0 %v637, 32
    %v670 = vpop.permute.xlu0 %669
    %671 = vrot.lane.b32.xlu0 %v638, 32
    %v672 = vpop.permute.xlu0 %671
    %673 = vrot.lane.b32.xlu0 %v639, 32
    %v674 = vpop.permute.xlu0 %673
    %675 = vrot.lane.b32.xlu0 %v640, 32
    %v676 = vpop.permute.xlu0 %675
    %677 = vrot.lane.b32.xlu0 %v641, 32
    %v678 = vpop.permute.xlu0 %677
    %679 = vrot.lane.b32.xlu0 %v642, 32
    %v680 = vpop.permute.xlu0 %679
    %681 = vrot.lane.b32.xlu0 %v643, 32
    %v682 = vpop.permute.xlu0 %681
    %683 = vrot.lane.b32.xlu0 %v644, 32
    %v684 = vpop.permute.xlu0 %683
    %685 = vrot.lane.b32.xlu0 %v645, 32
    %v686 = vpop.permute.xlu0 %685
    %687 = vrot.lane.b32.xlu0 %v646, 32
    %v688 = vpop.permute.xlu0 %687
    %689 = vrot.lane.b32.xlu0 %v647, 32
    %v690 = vpop.permute.xlu0 %689
    %691 = vrot.lane.b32.xlu0 %v648, 32
    %v692 = vpop.permute.xlu0 %691
    %693 = vrot.lane.b32.xlu0 %v649, 32
    %v694 = vpop.permute.xlu0 %693
    %695 = vrot.lane.b32.xlu0 %v650, 32
    %v696 = vpop.permute.xlu0 %695
    %697 = vrot.lane.b32.xlu0 %v651, 32
    %v698 = vpop.permute.xlu0 %697
    %699 = vrot.lane.b32.xlu0 %v652, 32
    %v700 = vpop.permute.xlu0 %699
    %717 = vrot.lane.b32.xlu0 %v637, 64
    %v718 = vpop.permute.xlu0 %717
    %719 = vrot.lane.b32.xlu0 %v638, 64
    %v720 = vpop.permute.xlu0 %719
    %721 = vrot.lane.b32.xlu0 %v639, 64
    %v722 = vpop.permute.xlu0 %721
    %723 = vrot.lane.b32.xlu0 %v640, 64
    %v724 = vpop.permute.xlu0 %723
    %725 = vrot.lane.b32.xlu0 %v641, 64
    %v726 = vpop.permute.xlu0 %725
    %727 = vrot.lane.b32.xlu0 %v642, 64
    %v728 = vpop.permute.xlu0 %727
    %729 = vrot.lane.b32.xlu0 %v643, 64
    %v730 = vpop.permute.xlu0 %729
    %731 = vrot.lane.b32.xlu0 %v644, 64
    %v732 = vpop.permute.xlu0 %731
    %733 = vrot.lane.b32.xlu0 %v645, 64
    %v734 = vpop.permute.xlu0 %733
    %735 = vrot.lane.b32.xlu0 %v646, 64
    %v736 = vpop.permute.xlu0 %735
    %737 = vrot.lane.b32.xlu0 %v647, 64
    %v738 = vpop.permute.xlu0 %737
    %739 = vrot.lane.b32.xlu0 %v648, 64
    %v740 = vpop.permute.xlu0 %739
    %741 = vrot.lane.b32.xlu0 %v649, 64
    %v742 = vpop.permute.xlu0 %741
    %743 = vrot.lane.b32.xlu0 %v650, 64
    %v744 = vpop.permute.xlu0 %743
    %745 = vrot.lane.b32.xlu0 %v651, 64
    %v746 = vpop.permute.xlu0 %745
    %747 = vrot.lane.b32.xlu0 %v652, 64
    %v748 = vpop.permute.xlu0 %747
    %765 = vrot.lane.b32.xlu0 %v637, 96
    %v766 = vpop.permute.xlu0 %765
    %767 = vrot.lane.b32.xlu0 %v638, 96
    %v768 = vpop.permute.xlu0 %767
    %769 = vrot.lane.b32.xlu0 %v639, 96
    %v770 = vpop.permute.xlu0 %769
    %771 = vrot.lane.b32.xlu0 %v640, 96
    %v772 = vpop.permute.xlu0 %771
    %773 = vrot.lane.b32.xlu0 %v641, 96
    %v774 = vpop.permute.xlu0 %773
    %775 = vrot.lane.b32.xlu0 %v642, 96
    %v776 = vpop.permute.xlu0 %775
    %777 = vrot.lane.b32.xlu0 %v643, 96
    %v778 = vpop.permute.xlu0 %777
    %779 = vrot.lane.b32.xlu0 %v644, 96
    %v780 = vpop.permute.xlu0 %779
    %781 = vrot.lane.b32.xlu0 %v645, 96
    %v782 = vpop.permute.xlu0 %781
    %783 = vrot.lane.b32.xlu0 %v646, 96
    %v784 = vpop.permute.xlu0 %783
    %785 = vrot.lane.b32.xlu0 %v647, 96
    %v786 = vpop.permute.xlu0 %785
    %787 = vrot.lane.b32.xlu0 %v648, 96
    %v788 = vpop.permute.xlu0 %787
    %789 = vrot.lane.b32.xlu0 %v649, 96
    %v790 = vpop.permute.xlu0 %789
    %791 = vrot.lane.b32.xlu0 %v650, 96
    %v792 = vpop.permute.xlu0 %791
    %793 = vrot.lane.b32.xlu0 %v651, 96
    %v794 = vpop.permute.xlu0 %793
    %795 = vrot.lane.b32.xlu0 %v652, 96
    %v796 = vpop.permute.xlu0 %795
    %v813 = vsel %vm169, %v637, %v670
    %v814 = vsel %vm169, %v638, %v672
    %v815 = vsel %vm169, %v639, %v674
    %v816 = vsel %vm169, %v640, %v676
    %v817 = vsel %vm169, %v641, %v678
    %v818 = vsel %vm169, %v642, %v680
    %v819 = vsel %vm169, %v643, %v682
    %v820 = vsel %vm169, %v644, %v684
    %v821 = vsel %vm169, %v645, %v686
    %v822 = vsel %vm169, %v646, %v688
    %v823 = vsel %vm169, %v647, %v690
    %v824 = vsel %vm169, %v648, %v692
    %v825 = vsel %vm169, %v649, %v694
    %v826 = vsel %vm169, %v650, %v696
    %v827 = vsel %vm169, %v651, %v698
    %v828 = vsel %vm169, %v652, %v700
    %v829 = vsel %vm178, %v813, %v718
    %v830 = vsel %vm178, %v814, %v720
    %v831 = vsel %vm178, %v815, %v722
    %v832 = vsel %vm178, %v816, %v724
    %v833 = vsel %vm178, %v817, %v726
    %v834 = vsel %vm178, %v818, %v728
    %v835 = vsel %vm178, %v819, %v730
    %v836 = vsel %vm178, %v820, %v732
    %v837 = vsel %vm178, %v821, %v734
    %v838 = vsel %vm178, %v822, %v736
    %v839 = vsel %vm178, %v823, %v738
    %v840 = vsel %vm178, %v824, %v740
    %v841 = vsel %vm178, %v825, %v742
    %v842 = vsel %vm178, %v826, %v744
    %v843 = vsel %vm178, %v827, %v746
    %v844 = vsel %vm178, %v828, %v748
    %v845 = vsel %vm187, %v829, %v766
    %v846 = vsel %vm187, %v830, %v768
    %v847 = vsel %vm187, %v831, %v770
    %v848 = vsel %vm187, %v832, %v772
    %v849 = vsel %vm187, %v833, %v774
    %v850 = vsel %vm187, %v834, %v776
    %v851 = vsel %vm187, %v835, %v778
    %v852 = vsel %vm187, %v836, %v780
    %v853 = vsel %vm187, %v837, %v782
    %v854 = vsel %vm187, %v838, %v784
    %v855 = vsel %vm187, %v839, %v786
    %v856 = vsel %vm187, %v840, %v788
    %v857 = vsel %vm187, %v841, %v790
    %v858 = vsel %vm187, %v842, %v792
    %v859 = vsel %vm187, %v843, %v794
    %v860 = vsel %vm187, %v844, %v796
    %v861 = vsel %vm286, %v845, 0.0
    %v862 = vsel %vm287, %v846, 0.0
    %v863 = vsel %vm288, %v847, 0.0
    %v864 = vsel %vm289, %v848, 0.0
    %v865 = vsel %vm290, %v849, 0.0
    %v866 = vsel %vm291, %v850, 0.0
    %v867 = vsel %vm292, %v851, 0.0
    %v868 = vsel %vm293, %v852, 0.0
    %v869 = vsel %vm294, %v853, 0.0
    %v870 = vsel %vm295, %v854, 0.0
    %v871 = vsel %vm296, %v855, 0.0
    %v872 = vsel %vm297, %v856, 0.0
    %v873 = vsel %vm298, %v857, 0.0
    %v874 = vsel %vm299, %v858, 0.0
    %v875 = vsel %vm300, %v859, 0.0
    %v876 = vsel %vm301, %v860, 0.0
    %v877 = vperm.slane %v24, 2
    %878 = vmatpush.msra.mxu0 %v876
    %879 = vmatpush.msra.mxu0 %v875
    %880 = vmatpush.msra.mxu0 %v874
    %881 = vmatpush.msra.mxu0 %v873
    %882 = vmatpush.msra.mxu0 %v872
    %883 = vmatpush.msra.mxu0 %v871
    %884 = vmatpush.msra.mxu0 %v870
    %885 = vmatpush.msra.mxu0 %v869
    %886 = vmatpush.msra.mxu0 %v868
    %887 = vmatpush.msra.mxu0 %v867
    %888 = vmatpush.msra.mxu0 %v866
    %889 = vmatpush.msra.mxu0 %v865
    %890 = vmatpush.msra.mxu0 %v864
    %891 = vmatpush.msra.mxu0 %v863
    %892 = vmatpush.msra.mxu0 %v862
    %893 = vmatpush.msra.mxu0 %v861
    %894 = vmatmul.f32.gmra.mxu0 %v635
    %v895 = vpop.f32.mrf.mxu0
    %v896 = vadd.f32 %v877, %v895
    %897 = vdwg.mxu0
    %898 = vst [vmem:[#allocation2] sm:$0xff] %v896
    // Predicated region
    $region26: #{tpu_custom_call.1} parent=1 // pred_check
      _
    $region27: #{tpu_custom_call.1} parent=1 // pred_check_branch
      %900 = sbr.rel (0) target = $region29
    $region28: #{tpu_custom_call.1} parent=1 // pred_region
      %902 = vsyncadd [#allocation3], 0
      %s904 = sshll.u32 [#allocation2], 4
      %s905 = int_to_ptr.vmem [resolvable:$true] %s904
      %s906 = sshll.u32 %s6, 4
      %s907 = int_to_ptr.hbm [resolvable:$true] %s906
      %909 = dma.vmem_to_hbm [thread:$0]  %s905, 128, %s907, [#allocation3]
    $region29: #{tpu_custom_call.1} parent=1 // pred_fallthru
      _
    // Predicated region
    $region30: #{tpu_custom_call.1} parent=1 // pred_check
      _
    $region31: #{tpu_custom_call.1} parent=1 // pred_check_branch
      %911 = sbr.rel (0) target = $region33
    $region32: #{tpu_custom_call.1} parent=1 // pred_region
      %913 = dma.done [#allocation3], 128
    $region33: #{tpu_custom_call.1} parent=1 // pred_fallthru
      _
    %914 = vsyncpa [#allocation3], 1

</llo_original>
